<compile_context>
chip_gen: v7x
topology: tpu7x:2x2x1
jax: 0.10.0
libtpu: 0.0.40
codegen_flags: <defaults>
</compile_context>

<pallas_src>
import functools

import jax
import jax.numpy as jnp
from jax.experimental import pallas as pl
from jax.experimental.pallas import tpu as pltpu

LANE = 128


def _round_up(x, m):
    return (x + m - 1) // m * m


def _pick_tm(N, cap=2048, split_for_two_cores=True):
    """Largest row tile <= cap that divides N (multiple of 8 sublanes).

    If the resulting grid would be a single step and N is large enough to be
    worth splitting, halve the tile so v7x's two TensorCores both get work
    (harmless on single-TC v5e/v6e).
    """
    assert N % 8 == 0, "pad N to a multiple of 8"
    tm = min(N, cap)
    while N % tm or tm % 8:
        tm -= 8
    if split_for_two_cores and tm == N and N >= 128 and (N // 2) % 8 == 0:
        tm = N // 2
    return tm


# ---------------------------------------------------------------------------
# One-time affine fold (hoisted out of the per-call wrapper).
# ---------------------------------------------------------------------------
def fold_params(params, *, compute_dtype=jnp.bfloat16):
    """Fold the 3 affine layers into (W_eff, b_eff), lane-padded to 128 cols.

    Valid because dropout is identity at eval and the layers are affine:
        W_eff = W1 @ W2 @ W3,   b_eff = (b1 @ W2 + b2) @ W3 + b3.
    Call ONCE per parameter set and reuse the result across forward calls.
    """
    hdot = functools.partial(jnp.dot, precision=jax.lax.Precision.HIGHEST)
    w_eff = hdot(hdot(params["w1"], params["w2"]), params["w3"])
    b_eff = hdot(hdot(params["b1"], params["w2"]) + params["b2"],
                 params["w3"]) + params["b3"]
    d_in, d_out = w_eff.shape
    d_pad = _round_up(max(d_out, LANE), LANE)
    w_eff_p = (jnp.zeros((d_in, d_pad), compute_dtype)
               .at[:, :d_out].set(w_eff.astype(compute_dtype)))
    b_eff_p = (jnp.zeros((1, d_pad), jnp.float32)
               .at[:, :d_out].set(b_eff.astype(jnp.float32)))
    return {"w_eff_p": w_eff_p, "b_eff_p": b_eff_p, "d_out": int(d_out)}


# ---------------------------------------------------------------------------
# Kernel 1: folded single-GEMM forward (fast path, bf16 MXU / f32 accumulate).
# ---------------------------------------------------------------------------
def _folded_kernel(v_ref, w_ref, b_ref, out_ref):
    acc = jnp.dot(v_ref[...], w_ref[...], preferred_element_type=jnp.float32)
    out_ref[...] = (acc + b_ref[...]).astype(out_ref.dtype)


def funsd_forward(V, folded, *, tm=None, out_dtype=None, keep_padded=False):
    """Eval-mode forward via the pre-folded affine map (see fold_params)."""
    N, d_in = V.shape
    w_eff_p, b_eff_p, d_out = folded["w_eff_p"], folded["b_eff_p"], folded["d_out"]
    d_pad = w_eff_p.shape[1]
    out_dtype = V.dtype if out_dtype is None else out_dtype

    v_in = V.astype(w_eff_p.dtype)  # bf16 MXU inputs (f32 accumulation below)

    if tm is None:
        tm = _pick_tm(N, cap=2048)
    assert N % tm == 0 and tm % 8 == 0, "pad N to a multiple of tm (mult of 8)"
    grid = (N // tm,)

    flops = 2 * N * d_in * d_pad
    bytes_accessed = (v_in.size * v_in.dtype.itemsize
                      + w_eff_p.size * w_eff_p.dtype.itemsize
                      + b_eff_p.size * 4
                      + N * d_pad * jnp.dtype(out_dtype).itemsize)

    out_padded = pl.pallas_call(
        _folded_kernel,
        out_shape=jax.ShapeDtypeStruct((N, d_pad), out_dtype),
        grid_spec=pltpu.PrefetchScalarGridSpec(
            num_scalar_prefetch=0,
            grid=grid,
            in_specs=[
                pl.BlockSpec((tm, d_in), lambda i: (i, 0)),     # V row tile (bf16)
                pl.BlockSpec((d_in, d_pad), lambda i: (0, 0)),  # W_eff (bf16, padded)
                pl.BlockSpec((1, d_pad), lambda i: (0, 0)),     # b_eff (f32, padded)
            ],
            out_specs=pl.BlockSpec((tm, d_pad), lambda i: (i, 0)),
        ),
        compiler_params=pltpu.CompilerParams(
            dimension_semantics=("parallel",),
            vmem_limit_bytes=32 * 1024 * 1024),
        cost_estimate=pl.CostEstimate(
            flops=flops, transcendentals=0, bytes_accessed=bytes_accessed),
    )(v_in, w_eff_p, b_eff_p)

    if keep_padded:
        return out_padded          # (N, 128) lane-dense slab, no extra slice/copy
    return out_padded[:, :d_out]


# ---------------------------------------------------------------------------
# Kernel 2: faithful 3-layer chain (bf16 MXU matmuls + bf16 intermediates,
# f32 accumulation / bias adds).
# ---------------------------------------------------------------------------
def _layered_kernel(v_ref, w1_ref, b1_ref, w2_ref, b2_ref, w3_ref, b3_ref,
                    out_ref):
    bf16 = w2_ref.dtype
    # Layer 1: (tm, d_in) @ (d_in, H) — bf16 inputs, f32 MXU accumulation.
    h1 = jnp.dot(v_ref[...], w1_ref[...], preferred_element_type=jnp.float32)
    h1 = (h1 + b1_ref[...]).astype(bf16)   # f32 bias add; bf16 right away so
                                           # the f32 copy dies (halves ld/st
                                           # traffic).  dropout1: identity.
    # Layer 2: (tm, H) @ (H, H)
    h2 = jnp.dot(h1, w2_ref[...], preferred_element_type=jnp.float32)
    h2 = (h2 + b2_ref[...]).astype(bf16)   # dropout2: identity (eval mode)

    # Layer 3: (tm, H) @ (H, d_pad) — lane-dense padded output columns.
    h3 = jnp.dot(h2, w3_ref[...], preferred_element_type=jnp.float32)
    h3 = h3 + b3_ref[...]                  # dropout3: identity (eval mode)

    out_ref[...] = h3.astype(out_ref.dtype)


def _pick_tm_layered(N, cap=512):
    """Prefer tiles that are multiples of 256 (v6e/v7x MXU M dimension)."""
    if N > 256 and N % 256 == 0:
        tm = min(cap, N - N % cap if N % cap == 0 else cap)
        tm = min(cap, N)
        while N % tm:
            tm -= 256
        if tm == N and (N // 2) % 256 == 0:
            tm = N // 2   # give v7x's second TensorCore a grid step
        return tm
    return _pick_tm(N, cap=cap, split_for_two_cores=False)


def funsd_forward_layers(V, params, *, tm=None, out_dtype=jnp.float32):
    N, d_in = V.shape
    hidden = params["w1"].shape[1]
    d_out = params["w3"].shape[1]
    d_pad = _round_up(max(d_out, LANE), LANE)

    bf16 = jnp.bfloat16
    v_bf = V.astype(bf16)
    w1 = params["w1"].astype(bf16)
    w2 = params["w2"].astype(bf16)
    w3 = params["w3"].astype(bf16)
    b1 = params["b1"].astype(jnp.float32)
    b2 = params["b2"].astype(jnp.float32)
    b3 = params["b3"].astype(jnp.float32)

    # Lane-dense third layer: zero-pad output columns to a multiple of 128.
    w3p = jnp.zeros((hidden, d_pad), bf16).at[:, :d_out].set(w3)
    b3p = jnp.zeros((1, d_pad), jnp.float32).at[:, :d_out].set(b3)

    if tm is None:
        tm = _pick_tm_layered(N)
    assert N % tm == 0 and tm % 8 == 0, "pad N to a multiple of tm (mult of 8)"
    grid = (N // tm,)

    flops = 2 * N * (d_in * hidden + hidden * hidden + hidden * d_pad)
    bytes_accessed = ((v_bf.size + w1.size + w2.size + w3p.size) * 2
                      + (b1.size + b2.size + b3p.size) * 4
                      + N * d_pad * jnp.dtype(out_dtype).itemsize)

    # Weights are grid-invariant (constant index maps): single-buffer them so
    # their VMEM footprint doesn't double (matters on v7x if net_size grows).
    wspec = lambda r, c: pl.BlockSpec((r, c), lambda i: (0, 0),
                                      pipeline_mode=pl.Buffered(1))
    bspec = lambda c: pl.BlockSpec((1, c), lambda i: (0, 0))

    out_padded = pl.pallas_call(
        _layered_kernel,
        out_shape=jax.ShapeDtypeStruct((N, d_pad), out_dtype),
        grid_spec=pltpu.PrefetchScalarGridSpec(
            num_scalar_prefetch=0,
            grid=grid,
            in_specs=[
                pl.BlockSpec((tm, d_in), lambda i: (i, 0)),  # V row tile (bf16)
                wspec(d_in, hidden),                         # W1
                bspec(hidden),                               # b1 (f32)
                wspec(hidden, hidden),                       # W2
                bspec(hidden),                               # b2 (f32)
                wspec(hidden, d_pad),                        # W3 (padded)
                bspec(d_pad),                                # b3 (padded, f32)
            ],
            out_specs=pl.BlockSpec((tm, d_pad), lambda i: (i, 0)),
        ),
        compiler_params=pltpu.CompilerParams(
            dimension_semantics=("parallel",),
            vmem_limit_bytes=32 * 1024 * 1024),
        cost_estimate=pl.CostEstimate(
            flops=flops, transcendentals=0, bytes_accessed=bytes_accessed),
    )(v_bf, w1, b1, w2, b2, w3p, b3p)
    return out_padded[:, :d_out]


def init_params(key, input_dim, output_dim, net_size=512, dtype=jnp.float32):
    """Deterministic parameter init (synthetic; mirrors module shapes)."""
    ks = jax.random.split(key, 6)
    scale = lambda fan_in: 1.0 / jnp.sqrt(jnp.asarray(fan_in, dtype))
    return {
        "w1": jax.random.normal(ks[0], (input_dim, net_size), dtype) * scale(input_dim),
        "b1": jax.random.normal(ks[1], (1, net_size), dtype) * 0.01,
        "w2": jax.random.normal(ks[2], (net_size, net_size), dtype) * scale(net_size),
        "b2": jax.random.normal(ks[3], (1, net_size), dtype) * 0.01,
        "w3": jax.random.normal(ks[4], (net_size, output_dim), dtype) * scale(net_size),
        "b3": jax.random.normal(ks[5], (1, output_dim), dtype) * 0.01,
    }


if __name__ == "__main__":
    key = jax.random.PRNGKey(0)
    k_v, k_v2, k_a, k_p = jax.random.split(key, 4)

    # 64 graph nodes, input_dim=32, output_dim=4 (net_size=512 hardcoded).
    N, input_dim, output_dim, num_edges = 64, 32, 4, 128
    net_size = 512

    V = jax.random.normal(k_v, (N, input_dim), jnp.float32)
    A = jax.random.normal(k_a, (N, N), jnp.float32)  # unused by forward (parity only)
    params = init_params(k_p, input_dim, output_dim, net_size)

    # One-time hoisted fold; reused across every forward call below.
    folded = fold_params(params)

    out_fast = jax.block_until_ready(funsd_forward(V, folded))
    out_layers = jax.block_until_ready(funsd_forward_layers(V, params))

    # High-precision f32 reference (dropout = identity at eval).
    hdot = functools.partial(jnp.dot, precision=jax.lax.Precision.HIGHEST)
    h1 = hdot(V, params["w1"]) + params["b1"]
    h2 = hdot(h1, params["w2"]) + params["b2"]
    ref = hdot(h2, params["w3"]) + params["b3"]

    f32 = lambda x: x.astype(jnp.float32)
    bf = lambda x: x.astype(jnp.bfloat16)

    # Bit-matched reference for the folded bf16-MXU path.
    w_eff = hdot(hdot(params["w1"], params["w2"]), params["w3"])
    b_eff = hdot(hdot(params["b1"], params["w2"]) + params["b2"],
                 params["w3"]) + params["b3"]
    ref_fold_bf = hdot(f32(bf(V)), f32(bf(w_eff))) + b_eff

    assert out_fast.shape == (N, output_dim)
    assert out_layers.shape == (N, output_dim)
    assert jnp.allclose(out_fast, ref_fold_bf, atol=2e-3, rtol=2e-3)
    assert jnp.allclose(out_fast, ref, atol=3e-2, rtol=3e-2)

    # Bit-matched reference for the layered bf16 path (bf16 intermediates,
    # f32 accumulation / bias adds — mirrors the kernel math).
    h1b = f32(bf(hdot(f32(bf(V)), f32(bf(params["w1"]))) + params["b1"]))
    h2b = f32(bf(hdot(h1b, f32(bf(params["w2"]))) + params["b2"]))
    ref_layer_bf = hdot(h2b, f32(bf(params["w3"]))) + params["b3"]
    assert jnp.allclose(out_layers, ref_layer_bf, atol=5e-3, rtol=5e-3)
    assert jnp.allclose(out_layers, ref, atol=5e-2, rtol=5e-2)

    # Batching recommendation: stack several graphs' node features along rows
    # into one call (grid gets >=2 steps at N>=128, feeding both v7x TCs).
    V2 = jax.random.normal(k_v2, (N, input_dim), jnp.float32)
    out_stacked = jax.block_until_ready(
        funsd_forward(jnp.concatenate([V, V2], axis=0), folded))
    assert out_stacked.shape == (2 * N, output_dim)
    assert jnp.allclose(out_stacked[:N], out_fast, atol=1e-5, rtol=1e-5)

    # bf16 output option (halves writeback HBM traffic at large N).
    out_bf16 = jax.block_until_ready(
        funsd_forward(V, folded, out_dtype=jnp.bfloat16))
    assert out_bf16.dtype == jnp.bfloat16
    assert jnp.allclose(f32(out_bf16), ref, atol=6e-2, rtol=6e-2)

    print("KERNEL_OK")
</pallas_src>

<mosaic_0001>
module attributes {stable_mosaic.version = 11 : i64} {
  func.func @_folded_kernel(%arg0: i32, %arg1: memref<64x32xbf16, #tpu.memory_space<vmem>>, %arg2: memref<32x128xbf16, #tpu.memory_space<vmem>>, %arg3: memref<1x128xf32, #tpu.memory_space<vmem>>, %arg4: memref<64x128xf32, #tpu.memory_space<vmem>>) attributes {dimension_semantics = [#tpu.dimension_semantics<parallel>], iteration_bounds = array<i64: 1>, scalar_prefetch = 0 : i64, scratch_operands = 0 : i64, tpu.core_type = #tpu.core_type<tc>, window_params = [{transform_indices = @transform_0, window_bounds = array<i64: 64, 32>}, {pipeline_mode = #tpu.pipeline_mode<synchronous>, transform_indices = @transform_1, window_bounds = array<i64: 32, 128>}, {pipeline_mode = #tpu.pipeline_mode<synchronous>, transform_indices = @transform_2, window_bounds = array<i64: 1, 128>}, {transform_indices = @transform_3, window_bounds = array<i64: 64, 128>}]} {
    %c0 = arith.constant 0 : index
    %c0_0 = arith.constant 0 : index
    %0 = vector.load %arg1[%c0, %c0_0] : memref<64x32xbf16, #tpu.memory_space<vmem>>, vector<64x32xbf16>
    %c0_1 = arith.constant 0 : index
    %c0_2 = arith.constant 0 : index
    %1 = vector.load %arg2[%c0_1, %c0_2] : memref<32x128xbf16, #tpu.memory_space<vmem>>, vector<32x128xbf16>
    %cst = arith.constant dense<0.000000e+00> : vector<64x128xf32>
    %2 = tpu.matmul %0, %1, %cst {dimension_numbers = #tpu.dot_dimension_numbers<[1], [0], [0], [1], [0, 0, 1, 1], [], []>} : vector<64x32xbf16>, vector<32x128xbf16>, vector<64x128xf32> -> vector<64x128xf32>
    %c0_3 = arith.constant 0 : index
    %c0_4 = arith.constant 0 : index
    %3 = vector.load %arg3[%c0_3, %c0_4] : memref<1x128xf32, #tpu.memory_space<vmem>>, vector<1x128xf32>
    %4 = vector.broadcast %3 : vector<1x128xf32> to vector<64x128xf32>
    %5 = arith.addf %2, %4 : vector<64x128xf32>
    %c0_5 = arith.constant 0 : index
    %c0_6 = arith.constant 0 : index
    %6 = vector.load %arg4[%c0_5, %c0_6] : memref<64x128xf32, #tpu.memory_space<vmem>>, vector<64x128xf32>
    tpu.vector_store %arg4[%c0_5, %c0_6], %5 {strides = array<i32>} : memref<64x128xf32, #tpu.memory_space<vmem>>, vector<64x128xf32>,
    return
  }
  func.func @transform_0(%arg0: i32) -> (i32, i32) {
    %c0_i32 = arith.constant 0 : i32
    %c0_i32_0 = arith.constant 0 : i32
    return %arg0, %c0_i32 : i32, i32
  }
  func.func @transform_1(%arg0: i32) -> (i32, i32) {
    %c0_i32 = arith.constant 0 : i32
    %c0_i32_0 = arith.constant 0 : i32
    %c0_i32_1 = arith.constant 0 : i32
    return %c0_i32, %c0_i32_0 : i32, i32
  }
  func.func @transform_2(%arg0: i32) -> (i32, i32) {
    %c0_i32 = arith.constant 0 : i32
    %c0_i32_0 = arith.constant 0 : i32
    %c0_i32_1 = arith.constant 0 : i32
    return %c0_i32, %c0_i32_0 : i32, i32
  }
  func.func @transform_3(%arg0: i32) -> (i32, i32) {
    %c0_i32 = arith.constant 0 : i32
    %c0_i32_0 = arith.constant 0 : i32
    return %arg0, %c0_i32 : i32, i32
  }
}

</mosaic_0001>

<llo_original>
// kernel: tpu_custom_call.1
$region0: #{tpu_custom_call.1}
  #allocation0 [shape = 'u32[]', space=smem, size = 0x4, offset = 0x4, fixed_abs, tag = 'smem constant byte address 0x4 - core index']
  #allocation1 [shape = 'u32[144,128]{1,0:T(1,128)}', space=vmem, size = 0x12000, scoped, tag = 'internal scratch']
  %s0 = inlined_call_operand.vmem [shape: bf16[64,32], index: 0, kind: input, shape index: {}]
  %s1 = inlined_call_operand.vmem [shape: bf16[32,128], index: 1, kind: input, shape index: {}]
  %s2 = inlined_call_operand.vmem [shape: f32[1,128], index: 2, kind: input, shape index: {}]
  %s3 = inlined_call_operand.hbm [shape: f32[64,128], index: 3, kind: output, shape index: {}]
  %s4 = sld [smem:[#allocation0]]
  $region22: #{tpu_custom_call.1} parent=0
    _
  %s6 = ssub.s32 1, %s4
  %s7 = scalar_select 0, %s6, %s4
  $region1: #{tpu_custom_call.1} parent=0
    #allocation2 [shape = 'u8[32768]{0}', space=vmem, size = 0x8000, scoped, tag = 'output window, operand 0, single buffered']
    #allocation3 [shape = 's32[1]{0}', space=sflag, size = 0x4, scoped, tag = 'scoped memory for tpu_custom_call.1']
    %8 = vsyncpa [#allocation3], 0
    // Predicated region
    $region2: #{tpu_custom_call.1} parent=1 // pred_check
      _
    $region3: #{tpu_custom_call.1} parent=1 // pred_check_branch
      %10 = sbr.rel (0) target = $region5
    $region4: #{tpu_custom_call.1} parent=1 // pred_region
      _
    $region5: #{tpu_custom_call.1} parent=1 // pred_fallthru
      _
    // Predicated region
    $region6: #{tpu_custom_call.1} parent=1 // pred_check
      _
    $region7: #{tpu_custom_call.1} parent=1 // pred_check_branch
      %12 = sbr.rel (0) target = $region9
    $region8: #{tpu_custom_call.1} parent=1 // pred_region
      _
    $region9: #{tpu_custom_call.1} parent=1 // pred_fallthru
      _
    // Predicated region
    $region10: #{tpu_custom_call.1} parent=1 // pred_check
      _
    $region11: #{tpu_custom_call.1} parent=1 // pred_check_branch
      %14 = sbr.rel (0) target = $region13
    $region12: #{tpu_custom_call.1} parent=1 // pred_region
      _
    $region13: #{tpu_custom_call.1} parent=1 // pred_fallthru
      _
    %v16 = vld [vmem:[%s0] sm:$0xf]
    %v17 = vld [vmem:[%s0 + $0x4] sm:$0xf]
    %v18 = vld [vmem:[%s0 + $0x8] sm:$0xf]
    %v19 = vld [vmem:[%s0 + $0xc] sm:$0xf]
    %v20 = vld [vmem:[%s0 + $0x10] sm:$0xf]
    %v21 = vld [vmem:[%s0 + $0x14] sm:$0xf]
    %v22 = vld [vmem:[%s0 + $0x18] sm:$0xf]
    %v23 = vld [vmem:[%s0 + $0x1c] sm:$0xf]
    %v24 = vld [vmem:[%s1] sm:$0xf]
    %v25 = vld [vmem:[%s1 + $0x4] sm:$0xf]
    %v26 = vld [vmem:[%s1 + $0x8] sm:$0xf]
    %v27 = vld [vmem:[%s1 + $0xc] sm:$0xf]
    %v28 = vld [vmem:[%s2] sm:$0x1]
    %v30 = vlaneseq
    %v31 = vshrl.u32 %v30, 7
    %v32 = vsub.s32 0, %v31
    %v33 = vrot.slane %v28, %v32
    %v43 = vunpack.c.l.b16 %v16
    %v44 = vunpack.c.l.b16 %v17
    %v45 = vunpack.c.l.b16 %v18
    %v46 = vunpack.c.l.b16 %v19
    %v47 = vunpack.c.l.b16 %v20
    %v48 = vunpack.c.l.b16 %v21
    %v49 = vunpack.c.l.b16 %v22
    %v50 = vunpack.c.l.b16 %v23
    %v51 = vpack.c.b16 %v44, %v43
    %v52 = vpack.c.b16 %v46, %v45
    %v53 = vpack.c.b16 %v48, %v47
    %v54 = vpack.c.b16 %v50, %v49
    %v59 = vunpack.c.l.b16 %v24
    %v60 = vunpack.c.l.b16 %v25
    %v61 = vunpack.c.l.b16 %v26
    %v62 = vunpack.c.l.b16 %v27
    %v63 = vpack.c.b16 %v60, %v59
    %v64 = vpack.c.b16 %v62, %v61
    %vm67 = vcmask 261120
    %v69 = vsel %vm67, %v51, 0
    %v72 = vsel %vm67, %v52, 0
    %v75 = vsel %vm67, %v53, 0
    %v78 = vsel %vm67, %v54, 0
    %80 = vmatprep.subr.bf16.mxu0 0
    %81 = vmatpush1.bf16.msra.mxu0 %v63
    %82 = vmatprep.subr.bf16.mxu0 0
    %83 = vmatpush1.bf16.msra.mxu0 %v64
    %84 = vmatprep.subr.bf16.mxu0 0
    %85 = vmatpush1.bf16.msra.mxu0 0
    %86 = vmatprep.subr.bf16.mxu0 0
    %87 = vmatpush1.bf16.msra.mxu0 0
    %88 = vmatprep.subr.bf16.mxu0 0
    %89 = vmatpush1.bf16.msra.mxu0 0
    %90 = vmatprep.subr.bf16.mxu0 0
    %91 = vmatpush1.bf16.msra.mxu0 0
    %92 = vmatprep.subr.bf16.mxu0 0
    %93 = vmatpush1.bf16.msra.mxu0 0
    %94 = vmatprep.subr.bf16.mxu0 0
    %95 = vmatpush1.bf16.msra.mxu0 0
    %96 = vmatprep.subr.bf16.mxu0 0
    %97 = vmatpush1.bf16.msra.mxu0 0
    %98 = vmatprep.subr.bf16.mxu0 0
    %99 = vmatpush1.bf16.msra.mxu0 0
    %100 = vmatprep.subr.bf16.mxu0 0
    %101 = vmatpush1.bf16.msra.mxu0 0
    %102 = vmatprep.subr.bf16.mxu0 0
    %103 = vmatpush1.bf16.msra.mxu0 0
    %104 = vmatprep.subr.bf16.mxu0 0
    %105 = vmatpush1.bf16.msra.mxu0 0
    %106 = vmatprep.subr.bf16.mxu0 0
    %107 = vmatpush1.bf16.msra.mxu0 0
    %108 = vmatprep.subr.bf16.mxu0 0
    %109 = vmatpush1.bf16.msra.mxu0 0
    %110 = vmatprep.subr.bf16.mxu0 0
    %111 = vmatpush1.bf16.msra.mxu0 0
    %112 = vmatprep.mubr.bf16.mxu0 0
    %113 = vmatmul.mubr.bf16.gmra.mrb[0].mxu0 %v69
    %v114 = vpop.f32.mrb[0].mxu0
    %v115 = vadd.f32 %v33, %v114
    %v116 = vpop.f32.mrb[0].mxu0
    %v117 = vpop.f32.mrb[0].mxu0
    %v118 = vadd.f32 %v33, %v117
    %v119 = vpop.f32.mrb[0].mxu0
    %120 = vmatprep.mubr.bf16.mxu0 0
    %121 = vmatmul.mubr.bf16.gmra.mrb[0].mxu0 %v72
    %v122 = vpop.f32.mrb[0].mxu0
    %v123 = vadd.f32 %v33, %v122
    %v124 = vpop.f32.mrb[0].mxu0
    %v125 = vpop.f32.mrb[0].mxu0
    %v126 = vadd.f32 %v33, %v125
    %v127 = vpop.f32.mrb[0].mxu0
    %128 = vmatprep.mubr.bf16.mxu0 0
    %129 = vmatmul.mubr.bf16.gmra.mrb[0].mxu0 %v75
    %v130 = vpop.f32.mrb[0].mxu0
    %v131 = vadd.f32 %v33, %v130
    %v132 = vpop.f32.mrb[0].mxu0
    %v133 = vpop.f32.mrb[0].mxu0
    %v134 = vadd.f32 %v33, %v133
    %v135 = vpop.f32.mrb[0].mxu0
    %136 = vmatprep.mubr.bf16.mxu0 0
    %137 = vmatmul.mubr.bf16.gmra.mrb[0].mxu0 %v78
    %v138 = vpop.f32.mrb[0].mxu0
    %v139 = vadd.f32 %v33, %v138
    %v140 = vpop.f32.mrb[0].mxu0
    %v141 = vpop.f32.mrb[0].mxu0
    %v142 = vadd.f32 %v33, %v141
    %v143 = vpop.f32.mrb[0].mxu0
    %144 = vdwg.mxu0
    %145 = vst [vmem:[#allocation2] sm:$0xff] %v115
    %146 = vst [vmem:[#allocation2 + $0x8] sm:$0xff] %v118
    %147 = vst [vmem:[#allocation2 + $0x10] sm:$0xff] %v123
    %148 = vst [vmem:[#allocation2 + $0x18] sm:$0xff] %v126
    %149 = vst [vmem:[#allocation2 + $0x20] sm:$0xff] %v131
    %150 = vst [vmem:[#allocation2 + $0x28] sm:$0xff] %v134
    %151 = vst [vmem:[#allocation2 + $0x30] sm:$0xff] %v139
    %152 = vst [vmem:[#allocation2 + $0x38] sm:$0xff] %v142
    // Predicated region
    $region14: #{tpu_custom_call.1} parent=1 // pred_check
      _
    $region15: #{tpu_custom_call.1} parent=1 // pred_check_branch
      %154 = sbr.rel (0) target = $region17
    $region16: #{tpu_custom_call.1} parent=1 // pred_region
      %s156 = ssub.s32 1024, 1024
      %157 = vsyncadd [#allocation3], %s156
      %s158 = sshll.u32 [#allocation2], 4
      %s159 = int_to_ptr.vmem [resolvable:$true] %s158
      %164 = dma.vmem_to_hbm [thread:$0]  %s159, 1024, %s3, [#allocation3], 128, 128, 8
    $region17: #{tpu_custom_call.1} parent=1 // pred_fallthru
      _
    // Predicated region
    $region18: #{tpu_custom_call.1} parent=1 // pred_check
      _
    $region19: #{tpu_custom_call.1} parent=1 // pred_check_branch
      %166 = sbr.rel (0) target = $region21
    $region20: #{tpu_custom_call.1} parent=1 // pred_region
      %167 = dma.done [#allocation3], 1024
    $region21: #{tpu_custom_call.1} parent=1 // pred_fallthru
      _
    %168 = vsyncpa [#allocation3], 1

</llo_original>
